<compile_context>
chip_gen: v6e
topology: v6e:2x2x1
jax: 0.10.0
libtpu: 0.0.40
codegen_flags: <defaults>
</compile_context>

<pallas_src>
import jax
import jax.numpy as jnp
from jax.experimental import pallas as pl
from jax.experimental.pallas import tpu as pltpu

EPS = 1e-6  # matches LayerNormalization(eps=10**-6)


def layernorm_kernel(alpha_ref, bias_ref, x_ref, o_ref):
    # alpha_ref / bias_ref: scalar params (shape (1,)) in SMEM.
    # x_ref / o_ref: (block_rows, H) tiles in VMEM (lane axis at full extent).
    n = x_ref.shape[-1]
    x = x_ref[...].astype(jnp.float32)

    # Pass 1: per-row mean.
    mean = jnp.sum(x, axis=-1, keepdims=True) * (1.0 / n)

    # Pass 2: centered sum of squares (two-pass => no catastrophic cancellation; the
    # re-read comes from VMEM/vregs, not HBM).  torch.std is unbiased (divide by N-1).
    diff = x - mean
    var = jnp.sum(diff * diff, axis=-1, keepdims=True) * (1.0 / (n - 1))
    std = jnp.sqrt(var)

    # Per-row scalar path on the (rows, 1) column only: exact divide, alpha folded in.
    # NOTE: eps is added to std (not variance) to match the PyTorch module exactly.
    scale = alpha_ref[0] / (std + EPS)                 # (rows, 1)

    # Two full-width VALU ops (diff already computed for the variance pass).
    o_ref[...] = (diff * scale + bias_ref[0]).astype(o_ref.dtype)


def _choose_block_rows(rows, h, itemsize, vmem_budget_bytes=24 << 20, max_rows=1024):
    # Resident VMEM per block row ~= 2 input + 2 output double buffers (input dtype)
    # plus the in-kernel f32 working set (~3 full-width f32 temporaries).
    bytes_per_row = 4 * h * itemsize + 3 * h * 4
    r = vmem_budget_bytes // max(bytes_per_row, 1)
    r = min(r, max_rows, max(rows, 8))
    # Keep at least 2 grid steps when there are enough rows, so the "parallel" row grid
    # can shard across v7x's two TensorCores.
    if rows >= 16:
        half = (((rows + 1) // 2) + 7) // 8 * 8
        r = min(r, half)
    r = max(8, (r // 8) * 8)  # sublane-aligned
    return int(r)


def layer_normalization(x, alpha, bias, *, block_rows=None, vmem_limit_bytes=48 << 20):
    """Pallas TPU implementation of the PyTorch LayerNormalization forward."""
    orig_shape = x.shape
    H = orig_shape[-1]
    if H < 2:
        raise ValueError("unbiased std (N-1) requires the normalized axis to have >= 2 elements")

    x2 = x.reshape(-1, H)
    R = x2.shape[0]

    if block_rows is None:
        block_rows = _choose_block_rows(R, H, jnp.dtype(x.dtype).itemsize)
    else:
        block_rows = max(8, (block_rows // 8) * 8)

    # Ragged final row block (if R % block_rows != 0) is handled by Pallas: loads are
    # clamped and out-of-bounds stores are masked; rows are independent so this is safe.
    grid = (pl.cdiv(R, block_rows),)

    out = pl.pallas_call(
        layernorm_kernel,
        out_shape=jax.ShapeDtypeStruct((R, H), x.dtype),
        grid=grid,
        in_specs=[
            pl.BlockSpec(memory_space=pltpu.MemorySpace.SMEM),   # alpha (1,)
            pl.BlockSpec(memory_space=pltpu.MemorySpace.SMEM),   # bias  (1,)
            pl.BlockSpec((block_rows, H), lambda i: (i, 0)),     # x tile, lane dim = full H
        ],
        out_specs=pl.BlockSpec((block_rows, H), lambda i: (i, 0)),
        compiler_params=pltpu.CompilerParams(
            dimension_semantics=("parallel",),
            vmem_limit_bytes=vmem_limit_bytes,
        ),
    )(alpha, bias, x2)

    return out.reshape(orig_shape)


def layer_normalization_ref(x, alpha, bias):
    # Pure-JAX reference matching the PyTorch semantics exactly (two-pass, unbiased std).
    xf = x.astype(jnp.float32)
    mean = jnp.mean(xf, axis=-1, keepdims=True)
    var = jnp.sum((xf - mean) ** 2, axis=-1, keepdims=True) / (x.shape[-1] - 1)
    std = jnp.sqrt(var)
    return (alpha[0] * (xf - mean) / (std + EPS) + bias[0]).astype(x.dtype)


if __name__ == "__main__":
    key = jax.random.PRNGKey(0)
    B, S, H = 2, 8, 32
    x = jax.random.normal(key, (B, S, H), dtype=jnp.float32)

    # Deterministic parameter init, same as nn.Parameter(torch.ones(1)/zeros(1)).
    alpha = jnp.ones((1,), dtype=jnp.float32)
    bias = jnp.zeros((1,), dtype=jnp.float32)

    out = layer_normalization(x, alpha, bias)
    out = jax.block_until_ready(out)

    ref = layer_normalization_ref(x, alpha, bias)
    assert out.shape == x.shape and out.dtype == x.dtype
    assert jnp.allclose(out, ref, atol=1e-5, rtol=2e-5), "mismatch vs reference"

    print("KERNEL_OK")
</pallas_src>

<mosaic_0001>
module attributes {stable_mosaic.version = 11 : i64} {
  func.func @layernorm_kernel(%arg0: i32, %arg1: memref<1xf32, #tpu.memory_space<smem>>, %arg2: memref<1xf32, #tpu.memory_space<smem>>, %arg3: memref<8x32xf32, #tpu.memory_space<vmem>>, %arg4: memref<8x32xf32, #tpu.memory_space<vmem>>) attributes {dimension_semantics = [#tpu.dimension_semantics<parallel>], iteration_bounds = array<i64: 2>, scalar_prefetch = 0 : i64, scratch_operands = 0 : i64, tpu.core_type = #tpu.core_type<tc>, window_params = [{transform_indices = @transform_0, window_bounds = array<i64: 1>}, {transform_indices = @transform_1, window_bounds = array<i64: 1>}, {transform_indices = @transform_2, window_bounds = array<i64: 8, 32>}, {transform_indices = @transform_3, window_bounds = array<i64: 8, 32>}]} {
    %c0 = arith.constant 0 : index
    %c0_0 = arith.constant 0 : index
    %0 = vector.load %arg3[%c0, %c0_0] : memref<8x32xf32, #tpu.memory_space<vmem>>, vector<8x32xf32>
    %cst = arith.constant dense<0.000000e+00> : vector<8xf32>
    %1 = vector.multi_reduction <add>, %0, %cst [1] : vector<8x32xf32> to vector<8xf32>
    %2 = vector.shape_cast %1 : vector<8xf32> to vector<8x1xf32>
    %cst_1 = arith.constant 3.125000e-02 : f32
    %3 = vector.broadcast %cst_1 : f32 to vector<8x1xf32>
    %4 = arith.mulf %2, %3 : vector<8x1xf32>
    %5 = vector.broadcast %4 : vector<8x1xf32> to vector<8x32xf32>
    %6 = arith.subf %0, %5 : vector<8x32xf32>
    %7 = arith.mulf %6, %6 : vector<8x32xf32>
    %cst_2 = arith.constant dense<0.000000e+00> : vector<8xf32>
    %8 = vector.multi_reduction <add>, %7, %cst_2 [1] : vector<8x32xf32> to vector<8xf32>
    %9 = vector.shape_cast %8 : vector<8xf32> to vector<8x1xf32>
    %cst_3 = arith.constant 0.0322580636 : f32
    %10 = vector.broadcast %cst_3 : f32 to vector<8x1xf32>
    %11 = arith.mulf %9, %10 : vector<8x1xf32>
    %12 = math.sqrt %11 : vector<8x1xf32>
    %c0_4 = arith.constant 0 : index
    %13 = memref.load %arg1[%c0_4] : memref<1xf32, #tpu.memory_space<smem>>
    %cst_5 = arith.constant 9.99999997E-7 : f32
    %14 = vector.broadcast %cst_5 : f32 to vector<8x1xf32>
    %15 = arith.addf %12, %14 : vector<8x1xf32>
    %16 = vector.broadcast %13 : f32 to vector<8x1xf32>
    %17 = arith.divf %16, %15 : vector<8x1xf32>
    %18 = vector.broadcast %17 : vector<8x1xf32> to vector<8x32xf32>
    %19 = arith.mulf %6, %18 : vector<8x32xf32>
    %c0_6 = arith.constant 0 : index
    %20 = memref.load %arg2[%c0_6] : memref<1xf32, #tpu.memory_space<smem>>
    %21 = vector.broadcast %20 : f32 to vector<8x32xf32>
    %22 = arith.addf %19, %21 : vector<8x32xf32>
    %c0_7 = arith.constant 0 : index
    %c0_8 = arith.constant 0 : index
    %23 = vector.load %arg4[%c0_7, %c0_8] : memref<8x32xf32, #tpu.memory_space<vmem>>, vector<8x32xf32>
    tpu.vector_store %arg4[%c0_7, %c0_8], %22 {strides = array<i32>} : memref<8x32xf32, #tpu.memory_space<vmem>>, vector<8x32xf32>,
    return
  }
  func.func @transform_0(%arg0: i32) -> i32 {
    %c0_i32 = arith.constant 0 : i32
    %c0_i32_0 = arith.constant 0 : i32
    return %c0_i32 : i32
  }
  func.func @transform_1(%arg0: i32) -> i32 {
    %c0_i32 = arith.constant 0 : i32
    %c0_i32_0 = arith.constant 0 : i32
    return %c0_i32 : i32
  }
  func.func @transform_2(%arg0: i32) -> (i32, i32) {
    %c0_i32 = arith.constant 0 : i32
    %c0_i32_0 = arith.constant 0 : i32
    return %arg0, %c0_i32 : i32, i32
  }
  func.func @transform_3(%arg0: i32) -> (i32, i32) {
    %c0_i32 = arith.constant 0 : i32
    %c0_i32_0 = arith.constant 0 : i32
    return %arg0, %c0_i32 : i32, i32
  }
}

</mosaic_0001>

<llo_original>
// kernel: tpu_custom_call.1
$region0: #{tpu_custom_call.1}
  #allocation0 [shape = 'u32[]', space=smem, size = 0x4, offset = 0x4, fixed_abs, tag = 'smem constant byte address 0x4 - core index']
  #allocation1 [shape = 'u32[144,128]{1,0:T(1,128)}', space=vmem, size = 0x12000, scoped, tag = 'internal scratch']
  #allocation2 [shape = 'f32[1]{0:T(128)S(6)}', space=smem, size = 0x200, scoped, tag = 'scoped memory for tpu_custom_call.1']
  #allocation3 [shape = 'f32[1]{0:T(128)S(6)}', space=smem, size = 0x200, scoped, tag = 'scoped memory for tpu_custom_call.1']
  %s0 = inlined_call_operand.<no memory space> [shape: f32[1], index: 0, kind: input, shape index: {}]
  %s1 = inlined_call_operand.<no memory space> [shape: f32[1], index: 1, kind: input, shape index: {}]
  %s2 = inlined_call_operand.hbm [shape: f32[16,32], index: 2, kind: input, shape index: {}]
  %s3 = inlined_call_operand.hbm [shape: f32[16,32], index: 3, kind: output, shape index: {}]
  %s4 = sld [smem:[#allocation0]]
  $region49: #{tpu_custom_call.1} parent=0
    _
  %s6 = ssub.s32 1, %s4
  %s7 = scalar_select 0, %s6, %s4
  %8 = sst [smem:[#allocation2]] %s0
  %9 = sst [smem:[#allocation3]] %s1
  $region1: #{tpu_custom_call.1} parent=0
    #allocation4 [shape = 'u8[8192]{0}', space=vmem, size = 0x2000, scoped, tag = 'input window, operand 2']
    #allocation5 [shape = 's32[2]{0}', space=sflag, size = 0x8, scoped, tag = 'scoped memory for tpu_custom_call.1']
    #allocation6 [shape = 's32[2]{0}', space=sflag, size = 0x8, scoped, tag = 'scoped memory for tpu_custom_call.1']
    #allocation7 [shape = 'u8[8192]{0}', space=vmem, size = 0x2000, scoped, tag = 'output window, operand 0']
    %10 = vsyncpa [#allocation5], 0
    %s11 = scalar_lea.sflag [#allocation5], 1
    %12 = vsyncpa %s11, 0
    %13 = vsyncpa [#allocation6], 0
    %s14 = scalar_lea.sflag [#allocation6], 1
    %15 = vsyncpa %s14, 0
    loop: start=0, step=1, limit=4
    $region2: #{tpu_custom_call.1} parent=1 // loop_pre_header
      _
    $region3: #{tpu_custom_call.1} parent=1 // loop_header
      %s17 = sphi 0, %s21
      %p18 = scmp.ge.s32.totalorder %s17, 4
      %s25 = sphi 0, %s25
      %s27 = sphi 0, %s25
      %s28 = sphi 0, %s27
      %s42 = sphi 0, %s28
      %s46 = sphi 0, %s46
      %s48 = sphi 0, %s46
      %s49 = sphi 0, %s48
      %s63 = sphi 0, %s49
      %s69 = sphi 0, %s71
      %s72 = sphi 0, %s69
      %s73 = sphi 0, %s72
      %s89 = sphi 0, %s73
      %s95 = sphi 0, %s97
      %s98 = sphi 0, %s95
      %s99 = sphi 0, %s98
      %s115 = sphi 0, %s99
    $region4: #{tpu_custom_call.1} parent=1 // loop_header_branch
      %20 = sbr.rel (%p18) target = $region8
    $region5: #{tpu_custom_call.1} parent=1 // loop_body
      %s22 = ssub.s32 %s17, 1
      %s23 = ssub.s32 %s17, 2
      %s24 = sadd.s32 %s17, 1
      %s26 = sadd.s32 %s25, 1
      %p29 = scmp.eq.s32.totalorder %s17, 1
      %p30 = scmp.ne.s32.totalorder %s25, %s27
      %p31 = scmp.eq.s32.totalorder %s17, 0
      %p32 = por %p30, %p31
      %p33 = scmp.ne.s32.totalorder %s25, %s27
      %p34 = scmp.eq.s32.totalorder %s22, 1
      %p35 = por %p33, %p34
      %p36 = scmp.ne.s32.totalorder %s27, %s28
      %p37 = scmp.eq.s32.totalorder %s22, 0
      %p38 = por %p36, %p37
      %p39 = scmp.ne.s32.totalorder %s27, %s28
      %p40 = scmp.eq.s32.totalorder %s23, 1
      %p41 = por %p39, %p40
      %p43 = scmp.ne.s32.totalorder %s28, %s42
      %p44 = scmp.eq.s32.totalorder %s23, 0
      %p45 = por %p43, %p44
      %s47 = sadd.s32 %s46, 1
      %p50 = scmp.eq.s32.totalorder %s17, 1
      %p51 = scmp.ne.s32.totalorder %s46, %s48
      %p52 = scmp.eq.s32.totalorder %s17, 0
      %p53 = por %p51, %p52
      %p54 = scmp.ne.s32.totalorder %s46, %s48
      %p55 = scmp.eq.s32.totalorder %s22, 1
      %p56 = por %p54, %p55
      %p57 = scmp.ne.s32.totalorder %s48, %s49
      %p58 = scmp.eq.s32.totalorder %s22, 0
      %p59 = por %p57, %p58
      %p60 = scmp.ne.s32.totalorder %s48, %s49
      %p61 = scmp.eq.s32.totalorder %s23, 1
      %p62 = por %p60, %p61
      %p64 = scmp.ne.s32.totalorder %s49, %s63
      %p65 = scmp.eq.s32.totalorder %s23, 0
      %p66 = por %p64, %p65
      %s67 = ssub.s32 %s17, %s24
      %p68 = scmp.eq.s32.totalorder %s67, 0
      %s70 = sadd.s32 %s69, 1
      %s71 = scalar_select %p68, %s69, %s70
      %p74 = pneg %p68
      %p75 = scmp.eq.s32.totalorder %s17, 1
      %p76 = por %p74, %p75
      %p77 = scmp.ne.s32.totalorder %s69, %s72
      %p78 = scmp.eq.s32.totalorder %s17, 0
      %p79 = por %p77, %p78
      %p80 = scmp.ne.s32.totalorder %s69, %s72
      %p81 = scmp.eq.s32.totalorder %s22, 1
      %p82 = por %p80, %p81
      %p83 = scmp.ne.s32.totalorder %s72, %s73
      %p84 = scmp.eq.s32.totalorder %s22, 0
      %p85 = por %p83, %p84
      %p86 = scmp.ne.s32.totalorder %s72, %s73
      %p87 = scmp.eq.s32.totalorder %s23, 1
      %p88 = por %p86, %p87
      %p90 = scmp.ne.s32.totalorder %s73, %s89
      %p91 = scmp.eq.s32.totalorder %s23, 0
      %p92 = por %p90, %p91
      %s93 = ssub.s32 %s17, %s24
      %p94 = scmp.eq.s32.totalorder %s93, 0
      %s96 = sadd.s32 %s95, 1
      %s97 = scalar_select %p94, %s95, %s96
      %p100 = pneg %p94
      %p101 = scmp.eq.s32.totalorder %s17, 1
      %p102 = por %p100, %p101
      %p103 = scmp.ne.s32.totalorder %s95, %s98
      %p104 = scmp.eq.s32.totalorder %s17, 0
      %p105 = por %p103, %p104
      %p106 = scmp.ne.s32.totalorder %s95, %s98
      %p107 = scmp.eq.s32.totalorder %s22, 1
      %p108 = por %p106, %p107
      %p109 = scmp.ne.s32.totalorder %s98, %s99
      %p110 = scmp.eq.s32.totalorder %s22, 0
      %p111 = por %p109, %p110
      %p112 = scmp.ne.s32.totalorder %s98, %s99
      %p113 = scmp.eq.s32.totalorder %s23, 1
      %p114 = por %p112, %p113
      %p116 = scmp.ne.s32.totalorder %s99, %s115
      %p117 = scmp.eq.s32.totalorder %s23, 0
      %p118 = por %p116, %p117
      %p119 = scmp.le.s32.totalorder 1, %s17
      %p120 = scmp.lt.s32.totalorder %s17, 3
      %p121 = pnand %p119, %p120
      %p122 = pneg %p121
      // Predicated region
      $region9: #{tpu_custom_call.1} parent=5 // pred_check
        _
      $region10: #{tpu_custom_call.1} parent=5 // pred_check_branch
        %124 = sbr.rel (%p121) target = $region12
      $region11: #{tpu_custom_call.1} parent=5 // pred_region
        %s125 = ssub.s32 %s17, 1
        // Predicated region
        $region13: #{tpu_custom_call.1} parent=11 // pred_check
          %p126 = pneg %p38
        $region14: #{tpu_custom_call.1} parent=11 // pred_check_branch
          %128 = sbr.rel (%p126) target = $region16
        $region15: #{tpu_custom_call.1} parent=11 // pred_region
          _
        $region16: #{tpu_custom_call.1} parent=11 // pred_fallthru
          _
        // Predicated region
        $region17: #{tpu_custom_call.1} parent=11 // pred_check
          %p129 = pneg %p59
        $region18: #{tpu_custom_call.1} parent=11 // pred_check_branch
          %131 = sbr.rel (%p129) target = $region20
        $region19: #{tpu_custom_call.1} parent=11 // pred_region
          _
        $region20: #{tpu_custom_call.1} parent=11 // pred_fallthru
          _
      $region12: #{tpu_custom_call.1} parent=5 // pred_fallthru
        _
      %p132 = scmp.lt.s32.totalorder %s17, 2
      // Predicated region
      $region21: #{tpu_custom_call.1} parent=5 // pred_check
        %p133 = pneg %p132
      $region22: #{tpu_custom_call.1} parent=5 // pred_check_branch
        %135 = sbr.rel (%p133) target = $region24
      $region23: #{tpu_custom_call.1} parent=5 // pred_region
        // Predicated region
        $region25: #{tpu_custom_call.1} parent=23 // pred_check
          %p136 = pneg %p79
        $region26: #{tpu_custom_call.1} parent=23 // pred_check_branch
          %138 = sbr.rel (%p136) target = $region28
        $region27: #{tpu_custom_call.1} parent=23 // pred_region
          %s139 = sand.u32 %s69, 1
          %s140 = scalar_lea.sflag [#allocation5], %s139
          %s141 = sand.u32 %s69, 1
          %s142 = smul.addr %s141, 8
          %s143 = scalar_lea.vmem [#allocation4], %s142
          %s145 = ssub.s32 128, 128
          %146 = vsyncadd %s140, %s145
          %s147 = smul.addr %s17, 128
          %s148 = scalar_lea.hbm %s2, %s147
          %s150 = sshll.u32 %s143, 4
          %s151 = int_to_ptr.vmem [resolvable:$true] %s150
          %153 = dma.hbm_to_vmem [thread:$0]  %s148, 128, %s151, %s140
        $region28: #{tpu_custom_call.1} parent=23 // pred_fallthru
          _
      $region24: #{tpu_custom_call.1} parent=5 // pred_fallthru
        _
      %p154 = scmp.le.s32.totalorder 1, %s17
      %p155 = scmp.lt.s32.totalorder %s17, 3
      %p156 = pnand %p154, %p155
      %p157 = pneg %p156
      // Predicated region
      $region29: #{tpu_custom_call.1} parent=5 // pred_check
        _
      $region30: #{tpu_custom_call.1} parent=5 // pred_check_branch
        %159 = sbr.rel (%p156) target = $region32
      $region31: #{tpu_custom_call.1} parent=5 // pred_region
        %s160 = ssub.s32 %s17, 1
        %s161 = sand.u32 %s72, 1
        %s162 = scalar_lea.sflag [#allocation5], %s161
        %s163 = sand.u32 %s72, 1
        %s164 = smul.addr %s163, 8
        %s165 = scalar_lea.vmem [#allocation4], %s164
        // Predicated region
        $region33: #{tpu_custom_call.1} parent=31 // pred_check
          %p166 = pneg %p85
        $region34: #{tpu_custom_call.1} parent=31 // pred_check_branch
          %168 = sbr.rel (%p166) target = $region36
        $region35: #{tpu_custom_call.1} parent=31 // pred_region
          %169 = dma.done %s162, 128
        $region36: #{tpu_custom_call.1} parent=31 // pred_fallthru
          _
        %p170 = pneg %p38
        %p171 = pneg %p35
        %p172 = pneg %p59
        %p173 = pneg %p56
        %s174 = sand.u32 %s72, 1
        %s175 = scalar_lea.sflag [#allocation5], %s174
        %s176 = sand.u32 %s72, 1
        %s177 = smul.addr %s176, 8
        %s178 = scalar_lea.vmem [#allocation4], %s177
        %p179 = pneg %p85
        %p180 = pneg %p82
        %p181 = pneg %p111
        %p182 = pneg %p108
        %s183 = sand.u32 %s98, 1
        %s184 = scalar_lea.sflag [#allocation6], %s183
        %s185 = sand.u32 %s98, 1
        %s186 = smul.addr %s185, 8
        %s187 = scalar_lea.vmem [#allocation7], %s186
        %v188 = vld [vmem:[%s165] sm:$0xff]
        %vm189 = vcmask 261120
        %v190 = vsel %vm189, %v188, 0.0
        %191 = vadd.xlane.f32.xlu0 %v190
        %v192 = vpop.xlane.xlu0 %191
        %v193 = vmul.f32 %v192, 0.03125
        %v194 = vsub.f32 %v188, %v193
        %v195 = vmul.f32 %v194, %v194
        %v196 = vsel %vm189, %v195, 0.0
        %197 = vadd.xlane.f32.xlu0 %v196
        %v198 = vpop.xlane.xlu0 %197
        %v199 = vmul.f32 %v198, 0.032258064
        %v200 = vrsqrt.pop %v199
        %v201 = vmul.f32 %v199, %v200
        %vm202 = vcmp.eq.f32.partialorder %v199, inf
        %v203 = vsel %vm202, %v199, %v201
        %vm204 = vcmp.eq.f32.partialorder %v199, 0.0
        %v205 = vand.u32 %v199, 2147483648
        %v206 = vsel %vm204, %v205, %v203
        %s207 = sld [smem:[#allocation2]]
        %v208 = vadd.f32 %v206, 1e-06
        %v209 = vstv %s207
        %v210 = vrcp.pop %v208
        %v211 = vmul.f32 %v209, %v210
        %v212 = vmul.f32 %v194, %v211
        %s213 = sld [smem:[#allocation3]]
        %v214 = vstv %s213
        %v215 = vadd.f32 %v212, %v214
        %216 = vst.msk [vmem:[%s187] sm:$0xff] %vm189, %v215
        %s217 = sand.u32 %s98, 1
        %s218 = scalar_lea.sflag [#allocation6], %s217
        %s219 = sand.u32 %s98, 1
        %s220 = smul.addr %s219, 8
        %s221 = scalar_lea.vmem [#allocation7], %s220
        // Predicated region
        $region37: #{tpu_custom_call.1} parent=31 // pred_check
          %p222 = pneg %p108
        $region38: #{tpu_custom_call.1} parent=31 // pred_check_branch
          %224 = sbr.rel (%p222) target = $region40
        $region39: #{tpu_custom_call.1} parent=31 // pred_region
          %s226 = ssub.s32 128, 128
          %227 = vsyncadd %s218, %s226
          %s228 = smul.addr %s22, 128
          %s229 = scalar_lea.hbm %s3, %s228
          %s231 = sshll.u32 %s221, 4
          %s232 = int_to_ptr.vmem [resolvable:$true] %s231
          %234 = dma.vmem_to_hbm [thread:$0]  %s232, 128, %s229, %s218
        $region40: #{tpu_custom_call.1} parent=31 // pred_fallthru
          _
      $region32: #{tpu_custom_call.1} parent=5 // pred_fallthru
        _
      %p235 = scmp.le.s32.totalorder 2, %s17
      // Predicated region
      $region41: #{tpu_custom_call.1} parent=5 // pred_check
        %p236 = pneg %p235
      $region42: #{tpu_custom_call.1} parent=5 // pred_check_branch
        %238 = sbr.rel (%p236) target = $region44
      $region43: #{tpu_custom_call.1} parent=5 // pred_region
        %s239 = ssub.s32 %s17, 2
        // Predicated region
        $region45: #{tpu_custom_call.1} parent=43 // pred_check
          %p240 = pneg %p114
        $region46: #{tpu_custom_call.1} parent=43 // pred_check_branch
          %242 = sbr.rel (%p240) target = $region48
        $region47: #{tpu_custom_call.1} parent=43 // pred_region
          %s243 = sand.u32 %s99, 1
          %s244 = scalar_lea.sflag [#allocation6], %s243
          %s245 = sand.u32 %s99, 1
          %s246 = smul.addr %s245, 8
          %s247 = scalar_lea.vmem [#allocation7], %s246
          %248 = dma.done %s244, 128
        $region48: #{tpu_custom_call.1} parent=43 // pred_fallthru
          _
      $region44: #{tpu_custom_call.1} parent=5 // pred_fallthru
        _
    $region6: #{tpu_custom_call.1} parent=1 // loop_footer
      %s21 = sadd.s32 1, %s17
    $region7: #{tpu_custom_call.1} parent=1 // loop_footer_branch
      %16 = sbr.rel target = $region3
    $region8: #{tpu_custom_call.1} parent=1 // loop_exit
      _
    %249 = vsyncpa [#allocation5], 1
    %s250 = scalar_lea.sflag [#allocation5], 1
    %251 = vsyncpa %s250, 1
    %252 = vsyncpa [#allocation6], 1
    %s253 = scalar_lea.sflag [#allocation6], 1
    %254 = vsyncpa %s253, 1

</llo_original>
